<compile_context>
chip_gen: v5e
topology: v5e:2x2
jax: 0.10.0
libtpu: 0.0.40
codegen_flags: <defaults>
</compile_context>

<pallas_src>
import jax
import jax.numpy as jnp
import numpy as np
from jax.experimental import pallas as pl
from jax.experimental.pallas import tpu as pltpu


def _grid_interp_kernel(grid_t_ref, coords_ref, out_ref):
    """Linear interpolation of a tiny (R, C) grid at TN coordinates.

    grid_t_ref : (C, R)  transposed grid (code dim on sublanes, resolution on lanes)
    coords_ref : (1, TN) coordinates in [-1, 1], N on the lane axis (lane-dense)
    out_ref    : (C, TN) transposed output (lane-dense stores)
    """
    C, R = grid_t_ref.shape
    TN = coords_ref.shape[1]

    c = coords_ref[...]                                   # (1, TN)
    c = (c + 1.0) * (0.5 * (R - 1))                       # -> [0, R-1]

    # Matches PyTorch clamps; extra clamp at 0 / R-1 keeps out-of-range coords well-defined.
    left_f = jnp.clip(jnp.floor(c), 0.0, float(R - 2))    # clamp(max=R-2)
    right_f = jnp.clip(jnp.ceil(c), 1.0, float(R - 1))    # clamp(min=1)
    weight = c - left_f                                   # (1, TN)

    left_i = left_f.astype(jnp.int32)                     # (1, TN)
    right_i = right_f.astype(jnp.int32)                   # (1, TN)

    # Fused interpolation weights: W_T[r, n] = (1-w[n])*[r==left[n]] + w[n]*[r==right[n]]
    row_r = jax.lax.broadcasted_iota(jnp.int32, (R, TN), 0)              # (R, TN)
    w_t = (jnp.where(row_r == left_i, 1.0 - weight, 0.0)
           + jnp.where(row_r == right_i, weight, 0.0))                   # (R, TN)

    # Single MXU contraction: (C, R) @ (R, TN) -> (C, TN). N sits on lanes -> dense stores.
    # (The R=16 contraction under-uses the MXU, but the kernel is HBM/store bound anyway.)
    out_ref[...] = jnp.dot(grid_t_ref[...], w_t, preferred_element_type=jnp.float32)


def _round_up(x, m):
    return ((x + m - 1) // m) * m


def grid_forward(coords, indices, codebook, *, tn=2048):
    """Pallas forward of Grid (linear path).

    coords: (N,) f32 in [-1, 1]; indices: (R, K); codebook: (K, C).  Returns (N, C).
    """
    indices = indices.astype(jnp.float32)
    codebook = codebook.astype(jnp.float32)
    coords = coords.astype(jnp.float32)

    R, _K = indices.shape
    C = codebook.shape[1]
    N = coords.shape[0]

    # Static (R, C) grid with straight-through estimator, computed once in plain JAX.
    soft_grid = jax.nn.softmax(indices, axis=-1) @ codebook
    max_grid = codebook[jnp.argmax(indices, axis=1)]
    grid = jax.lax.stop_gradient(max_grid - soft_grid) + soft_grid       # (R, C)
    grid_t = grid.T                                                      # (C, R)

    # Lane-dense coordinate layout: (1, N_pad), N padded to a multiple of the tile size.
    tn = min(tn, _round_up(max(N, 1), 128))
    n_pad = _round_up(max(N, 1), tn)
    coords_row = jnp.zeros((1, n_pad), jnp.float32).at[0, :N].set(coords)

    out_t = pl.pallas_call(
        _grid_interp_kernel,
        out_shape=jax.ShapeDtypeStruct((C, n_pad), jnp.float32),
        grid=(n_pad // tn,),
        in_specs=[
            pl.BlockSpec((C, R), lambda i: (0, 0)),       # tiny constant-index block
            pl.BlockSpec((1, tn), lambda i: (0, i)),      # coords tile, N on lanes
        ],
        out_specs=pl.BlockSpec((C, tn), lambda i: (0, i)),
        compiler_params=pltpu.CompilerParams(
            dimension_semantics=("parallel",)),
    )(grid_t, coords_row)

    return out_t[:, :N].T                                                # (N, C)


def grid_forward_ref(coords, indices, codebook):
    """Pure-JAX reference mirroring the PyTorch forward (linear path)."""
    R = indices.shape[0]
    soft_grid = jax.nn.softmax(indices, axis=-1) @ codebook
    max_grid = codebook[jnp.argmax(indices, axis=1)]
    grid = jax.lax.stop_gradient(max_grid - soft_grid) + soft_grid
    c = (coords + 1.0) / 2.0 * (R - 1)
    left = jnp.minimum(jnp.floor(c), R - 2).astype(jnp.int32)
    right = jnp.maximum(jnp.ceil(c), 1).astype(jnp.int32)
    weight = (c - left)[:, None]
    return (1.0 - weight) * grid[left] + weight * grid[right]


if __name__ == "__main__":
    # Module hyper-parameters (small, consistent with __init__)
    grid_resolution = 16
    bitwidth = 6
    code_size = 4
    N = 8  # number of query coordinates

    key = jax.random.PRNGKey(0)
    k_cb, k_idx, k_coords = jax.random.split(key, 3)

    codebook = 0.01 * jax.random.normal(k_cb, (2 ** bitwidth, code_size), dtype=jnp.float32)
    indices = 0.01 * jax.random.normal(k_idx, (grid_resolution, 2 ** bitwidth), dtype=jnp.float32)
    coords = jax.random.uniform(k_coords, (N,), dtype=jnp.float32, minval=-1.0, maxval=1.0)

    out = jax.block_until_ready(grid_forward(coords, indices, codebook))
    ref = grid_forward_ref(coords, indices, codebook)
    np.testing.assert_allclose(np.asarray(out), np.asarray(ref), rtol=1e-5, atol=1e-6)

    # Exercise the multi-tile (grid > 1) path with a small tile size; still tiny shapes.
    N2 = 300
    coords2 = jax.random.uniform(jax.random.PRNGKey(1), (N2,), dtype=jnp.float32,
                                 minval=-1.0, maxval=1.0)
    out2 = jax.block_until_ready(grid_forward(coords2, indices, codebook, tn=128))
    ref2 = grid_forward_ref(coords2, indices, codebook)
    np.testing.assert_allclose(np.asarray(out2), np.asarray(ref2), rtol=1e-5, atol=1e-6)

    print("KERNEL_OK")
</pallas_src>

<mosaic_0001>
module attributes {stable_mosaic.version = 11 : i64} {
  func.func @_grid_interp_kernel(%arg0: i32, %arg1: memref<4x16xf32, #tpu.memory_space<vmem>>, %arg2: memref<1x128xf32, #tpu.memory_space<vmem>>, %arg3: memref<4x128xf32, #tpu.memory_space<vmem>>) attributes {dimension_semantics = [#tpu.dimension_semantics<parallel>], iteration_bounds = array<i64: 1>, scalar_prefetch = 0 : i64, scratch_operands = 0 : i64, tpu.core_type = #tpu.core_type<tc>, window_params = [{pipeline_mode = #tpu.pipeline_mode<synchronous>, transform_indices = @transform_0, window_bounds = array<i64: 4, 16>}, {transform_indices = @transform_1, window_bounds = array<i64: 1, 128>}, {transform_indices = @transform_2, window_bounds = array<i64: 4, 128>}]} {
    %c0 = arith.constant 0 : index
    %c0_0 = arith.constant 0 : index
    %0 = vector.load %arg2[%c0, %c0_0] : memref<1x128xf32, #tpu.memory_space<vmem>>, vector<1x128xf32>
    %cst = arith.constant 1.000000e+00 : f32
    %1 = vector.broadcast %cst : f32 to vector<1x128xf32>
    %2 = arith.addf %0, %1 : vector<1x128xf32>
    %cst_1 = arith.constant 7.500000e+00 : f32
    %3 = vector.broadcast %cst_1 : f32 to vector<1x128xf32>
    %4 = arith.mulf %2, %3 : vector<1x128xf32>
    %5 = math.floor %4 : vector<1x128xf32>
    %cst_2 = arith.constant 0.000000e+00 : f32
    %cst_3 = arith.constant 1.400000e+01 : f32
    %6 = vector.broadcast %cst_2 : f32 to vector<1x128xf32>
    %7 = arith.maximumf %6, %5 : vector<1x128xf32>
    %8 = vector.broadcast %cst_3 : f32 to vector<1x128xf32>
    %9 = arith.minimumf %8, %7 : vector<1x128xf32>
    %10 = math.ceil %4 : vector<1x128xf32>
    %cst_4 = arith.constant 1.000000e+00 : f32
    %cst_5 = arith.constant 1.500000e+01 : f32
    %11 = vector.broadcast %cst_4 : f32 to vector<1x128xf32>
    %12 = arith.maximumf %11, %10 : vector<1x128xf32>
    %13 = vector.broadcast %cst_5 : f32 to vector<1x128xf32>
    %14 = arith.minimumf %13, %12 : vector<1x128xf32>
    %15 = arith.subf %4, %9 : vector<1x128xf32>
    %16 = arith.fptosi %9 : vector<1x128xf32> to vector<1x128xi32>
    %17 = arith.fptosi %14 : vector<1x128xf32> to vector<1x128xi32>
    %18 = tpu.iota {dimensions = array<i32: 0>} : vector<16x128xi32>
    %19 = vector.broadcast %16 : vector<1x128xi32> to vector<16x128xi32>
    %20 = arith.cmpi eq, %18, %19 : vector<16x128xi32>
    %cst_6 = arith.constant 1.000000e+00 : f32
    %21 = vector.broadcast %cst_6 : f32 to vector<1x128xf32>
    %22 = arith.subf %21, %15 : vector<1x128xf32>
    %cst_7 = arith.constant 0.000000e+00 : f32
    %23 = vector.shape_cast %22 : vector<1x128xf32> to vector<1x128xf32>
    %24 = vector.broadcast %23 : vector<1x128xf32> to vector<16x128xf32>
    %25 = vector.broadcast %cst_7 : f32 to vector<16x128xf32>
    %26 = arith.select %20, %24, %25 : vector<16x128xi1>, vector<16x128xf32>
    %27 = vector.broadcast %17 : vector<1x128xi32> to vector<16x128xi32>
    %28 = arith.cmpi eq, %18, %27 : vector<16x128xi32>
    %cst_8 = arith.constant 0.000000e+00 : f32
    %29 = vector.shape_cast %15 : vector<1x128xf32> to vector<1x128xf32>
    %30 = vector.broadcast %29 : vector<1x128xf32> to vector<16x128xf32>
    %31 = vector.broadcast %cst_8 : f32 to vector<16x128xf32>
    %32 = arith.select %28, %30, %31 : vector<16x128xi1>, vector<16x128xf32>
    %33 = arith.addf %26, %32 : vector<16x128xf32>
    %c0_9 = arith.constant 0 : index
    %c0_10 = arith.constant 0 : index
    %34 = vector.load %arg1[%c0_9, %c0_10] : memref<4x16xf32, #tpu.memory_space<vmem>>, vector<4x16xf32>
    %cst_11 = arith.constant dense<0.000000e+00> : vector<4x128xf32>
    %35 = tpu.matmul %34, %33, %cst_11 {dimension_numbers = #tpu.dot_dimension_numbers<[1], [0], [0], [1], [0, 0, 1, 1], [], []>} : vector<4x16xf32>, vector<16x128xf32>, vector<4x128xf32> -> vector<4x128xf32>
    %c0_12 = arith.constant 0 : index
    %c0_13 = arith.constant 0 : index
    %36 = vector.load %arg3[%c0_12, %c0_13] : memref<4x128xf32, #tpu.memory_space<vmem>>, vector<4x128xf32>
    tpu.vector_store %arg3[%c0_12, %c0_13], %35 {strides = array<i32>} : memref<4x128xf32, #tpu.memory_space<vmem>>, vector<4x128xf32>,
    return
  }
  func.func @transform_0(%arg0: i32) -> (i32, i32) {
    %c0_i32 = arith.constant 0 : i32
    %c0_i32_0 = arith.constant 0 : i32
    %c0_i32_1 = arith.constant 0 : i32
    return %c0_i32, %c0_i32_0 : i32, i32
  }
  func.func @transform_1(%arg0: i32) -> (i32, i32) {
    %c0_i32 = arith.constant 0 : i32
    %c0_i32_0 = arith.constant 0 : i32
    return %c0_i32, %arg0 : i32, i32
  }
  func.func @transform_2(%arg0: i32) -> (i32, i32) {
    %c0_i32 = arith.constant 0 : i32
    %c0_i32_0 = arith.constant 0 : i32
    return %c0_i32, %arg0 : i32, i32
  }
}

</mosaic_0001>

<llo_original>
// kernel: tpu_custom_call.1
$region0: #{tpu_custom_call.1}
  #allocation0 [shape = 'u32[]', space=smem, size = 0x4, offset = 0x4, fixed_abs, tag = 'smem constant byte address 0x4 - core index']
  #allocation1 [shape = 'u32[72,128]{1,0:T(1,128)}', space=vmem, size = 0x9000, scoped, tag = 'internal scratch']
  %s0 = inlined_call_operand.hbm [shape: f32[4,16], index: 0, kind: input, shape index: {}]
  %s1 = inlined_call_operand.hbm [shape: f32[1,128], index: 1, kind: input, shape index: {}]
  %s2 = inlined_call_operand.hbm [shape: f32[4,128], index: 2, kind: output, shape index: {}]
  %s3 = sld [smem:[#allocation0]]
  $region26: #{tpu_custom_call.1} parent=0
    _
  %s5 = ssub.s32 1, %s3
  %s6 = scalar_select 0, %s5, %s3
  $region1: #{tpu_custom_call.1} parent=0
    #allocation2 [shape = 'u8[2048]{0}', space=vmem, size = 0x800, scoped, tag = 'input window, operand 0, single buffered']
    #allocation3 [shape = 's32[1]{0}', space=sflag, size = 0x4, scoped, tag = 'scoped memory for tpu_custom_call.1']
    #allocation4 [shape = 's32[1]{0}', space=sflag, size = 0x4, scoped, tag = 'scoped memory for tpu_custom_call.1']
    #allocation5 [shape = 'u8[512]{0}', space=vmem, size = 0x400, scoped, tag = 'input window, operand 1, single buffered']
    #allocation6 [shape = 's32[1]{0}', space=sflag, size = 0x4, scoped, tag = 'scoped memory for tpu_custom_call.1']
    #allocation7 [shape = 'u8[2048]{0}', space=vmem, size = 0x800, scoped, tag = 'output window, operand 0, single buffered']
    %7 = vsyncpa [#allocation3], 0
    %8 = vsyncpa [#allocation6], 0
    %9 = vsyncpa [#allocation4], 0
    // Predicated region
    $region2: #{tpu_custom_call.1} parent=1 // pred_check
      _
    $region3: #{tpu_custom_call.1} parent=1 // pred_check_branch
      %11 = sbr.rel (0) target = $region5
    $region4: #{tpu_custom_call.1} parent=1 // pred_region
      %13 = vsyncadd [#allocation3], 0
      %s15 = sshll.u32 %s0, 4
      %s16 = int_to_ptr.hbm [resolvable:$true] %s15
      %s17 = sshll.u32 [#allocation2], 4
      %s18 = int_to_ptr.vmem [resolvable:$true] %s17
      %20 = dma.hbm_to_vmem [thread:$0]  %s16, 64, %s18, [#allocation3]
    $region5: #{tpu_custom_call.1} parent=1 // pred_fallthru
      _
    // Predicated region
    $region6: #{tpu_custom_call.1} parent=1 // pred_check
      _
    $region7: #{tpu_custom_call.1} parent=1 // pred_check_branch
      %22 = sbr.rel (0) target = $region9
    $region8: #{tpu_custom_call.1} parent=1 // pred_region
      %24 = vsyncadd [#allocation6], 0
      %s26 = sshll.u32 %s1, 4
      %s27 = int_to_ptr.hbm [resolvable:$true] %s26
      %s28 = sshll.u32 [#allocation5], 4
      %s29 = int_to_ptr.vmem [resolvable:$true] %s28
      %31 = dma.hbm_to_vmem [thread:$0]  %s27, 16, %s29, [#allocation6]
    $region9: #{tpu_custom_call.1} parent=1 // pred_fallthru
      _
    // Predicated region
    $region10: #{tpu_custom_call.1} parent=1 // pred_check
      _
    $region11: #{tpu_custom_call.1} parent=1 // pred_check_branch
      %33 = sbr.rel (0) target = $region13
    $region12: #{tpu_custom_call.1} parent=1 // pred_region
      %35 = dma.done [#allocation3], 64
    $region13: #{tpu_custom_call.1} parent=1 // pred_fallthru
      _
    // Predicated region
    $region14: #{tpu_custom_call.1} parent=1 // pred_check
      _
    $region15: #{tpu_custom_call.1} parent=1 // pred_check_branch
      %37 = sbr.rel (0) target = $region17
    $region16: #{tpu_custom_call.1} parent=1 // pred_region
      %39 = dma.done [#allocation6], 16
    $region17: #{tpu_custom_call.1} parent=1 // pred_fallthru
      _
    %v40 = vld [vmem:[#allocation5] sm:$0x1]
    %v41 = vadd.f32 %v40, 1.0
    %v42 = vmul.f32 %v41, 7.5
    %v43 = vfloor.f32 %v42
    %v44 = vmax.f32 %v43, 0.0
    %v45 = vmin.f32 %v44, 14.0
    %v46 = vceil.f32 %v42
    %v47 = vmax.f32 %v46, 1.0
    %v48 = vmin.f32 %v47, 15.0
    %v49 = vsub.f32 %v42, %v45
    %v50 = vcvt.f32.s32.to.zero.pseudo %v45
    %v51 = vcvt.f32.s32.to.zero.pseudo %v48
    %v52 = vlaneseq
    %v53 = vshrl.u32 %v52, 7
    %v54 = vadd.s32 %v53, 8
    %v55 = vperm.slane %v50, 0
    %vm56 = vcmp.eq.s32.totalorder %v53, %v55
    %vm57 = vcmp.eq.s32.totalorder %v54, %v55
    %v58 = vsub.f32 1.0, %v49
    %v60 = vperm.slane %v58, 0
    %v62 = vsel %vm56, %v60, 0.0
    %v63 = vsel %vm57, %v60, 0.0
    %v64 = vperm.slane %v51, 0
    %vm65 = vcmp.eq.s32.totalorder %v53, %v64
    %vm66 = vcmp.eq.s32.totalorder %v54, %v64
    %v68 = vperm.slane %v49, 0
    %v70 = vsel %vm65, %v68, 0.0
    %v71 = vsel %vm66, %v68, 0.0
    %v72 = vadd.f32 %v62, %v70
    %v73 = vadd.f32 %v63, %v71
    %v74 = vld [vmem:[#allocation2] sm:$0xf]
    %vm75 = vcmask 130048
    %v77 = vsel %vm75, %v74, 0
    %79 = vmatpush.msra.mxu0 0.0
    %80 = vmatpush.msra.mxu0 0.0
    %81 = vmatpush.msra.mxu0 0.0
    %82 = vmatpush.msra.mxu0 0.0
    %83 = vmatpush.msra.mxu0 0.0
    %84 = vmatpush.msra.mxu0 0.0
    %85 = vmatpush.msra.mxu0 0.0
    %86 = vmatpush.msra.mxu0 0.0
    %87 = vmatpush.msra.mxu0 0.0
    %88 = vmatpush.msra.mxu0 0.0
    %89 = vmatpush.msra.mxu0 0.0
    %90 = vmatpush.msra.mxu0 0.0
    %91 = vmatpush.msra.mxu0 0.0
    %92 = vmatpush.msra.mxu0 0.0
    %93 = vmatpush.msra.mxu0 %v73
    %94 = vmatpush.msra.mxu0 %v72
    %95 = vmatmul.f32.gmra.mxu0 %v77
    %v96 = vpop.f32.mrf.mxu0
    %v97 = vadd.f32 0.0, %v96
    %98 = vdwg.mxu0
    %99 = vst [vmem:[#allocation7] sm:$0xf] %v97
    // Predicated region
    $region18: #{tpu_custom_call.1} parent=1 // pred_check
      _
    $region19: #{tpu_custom_call.1} parent=1 // pred_check_branch
      %101 = sbr.rel (0) target = $region21
    $region20: #{tpu_custom_call.1} parent=1 // pred_region
      %103 = vsyncadd [#allocation4], 0
      %s105 = sshll.u32 [#allocation7], 4
      %s106 = int_to_ptr.vmem [resolvable:$true] %s105
      %s107 = sshll.u32 %s2, 4
      %s108 = int_to_ptr.hbm [resolvable:$true] %s107
      %110 = dma.vmem_to_hbm [thread:$0]  %s106, 64, %s108, [#allocation4]
    $region21: #{tpu_custom_call.1} parent=1 // pred_fallthru
      _
    // Predicated region
    $region22: #{tpu_custom_call.1} parent=1 // pred_check
      _
    $region23: #{tpu_custom_call.1} parent=1 // pred_check_branch
      %112 = sbr.rel (0) target = $region25
    $region24: #{tpu_custom_call.1} parent=1 // pred_region
      %114 = dma.done [#allocation4], 64
    $region25: #{tpu_custom_call.1} parent=1 // pred_fallthru
      _
    %115 = vsyncpa [#allocation3], 1
    %116 = vsyncpa [#allocation6], 1
    %117 = vsyncpa [#allocation4], 1

</llo_original>
